<compile_context>
chip_gen: v5e
topology: v5e:2x2
jax: 0.10.0
libtpu: 0.0.40
codegen_flags: <defaults>
</compile_context>

<pallas_src>
import functools
import math

import jax
import jax.numpy as jnp
from jax.experimental import pallas as pl
from jax.experimental.pallas import tpu as pltpu

EPS = 1e-6          # matches nn.CosineSimilarity(eps=1e-06)
NEG_INF = -1e30     # softmax bias for padded cluster columns
LANE = 128

SMEM_SPEC = pl.BlockSpec(memory_space=pltpu.MemorySpace.SMEM)


def _round_up(x, m):
    return ((x + m - 1) // m) * m


def _vmem_limits():
    """(vmem_limit_bytes to request, planning budget for resident buffers)."""
    try:
        cap = int(pltpu.get_tpu_info().vmem_capacity_bytes)
    except Exception:
        cap = 128 * 1024 * 1024
    limit = (cap * 3) // 4          # scoped VMEM we ask the compiler for
    budget = (limit * 3) // 5       # what the tile picker may plan against
    return limit, budget


def _pick_tile(n, fits):
    for t in (2048, 1024, 512, 256, 128, 64, 32, 16, 8):
        if t <= n and n % t == 0 and fits(t):
            return t
    for t in (8, 16, 32, 64, 128):
        if t <= n and n % t == 0:
            return t
    return n


def _encode_tile(n, hp, kp, n_variants, mm_bytes, budget):
    xw_width = n_variants * hp

    def fits(tm):
        adj = 2 * tm * n * mm_bytes                       # double-buffered A tile
        xw = 2 * n * xw_width * mm_bytes                  # per-relation RHS (X@Wg)
        wts = 2 * hp * (hp + kp) * mm_bytes + (8 << 10)   # head weights / biases
        outs = 2 * n_variants * tm * (hp + kp) * 4        # f32 h / c output buffers
        tmps = 2 * n_variants * tm * (hp + kp) * 4        # z / u / exp temporaries
        return adj + xw + wts + outs + tmps + (2 << 20) <= budget

    return _pick_tile(n, fits)


def _loss_tile(n, l, hp, kp, budget):
    def fits(tn):
        ins = 2 * 4 * l * tn * (3 * hp + 2 * kp)          # double-buffered f32 inputs
        tmps = 8 * l * tn * (hp + kp)                     # normalized copies etc.
        return ins + tmps + (2 << 20) <= budget

    return _pick_tile(n, fits)


# ----------------------------------------------------------------------------
# Kernel 1: fused GCN + (structure|semantic) heads for the anchor AND negative
# feature variants (they share the same adjacency).  grid = (relation, row_tile)
# ----------------------------------------------------------------------------
def _elu(s):
    return jnp.where(s > 0, s, jnp.exp(jnp.minimum(s, 0.0)) - 1.0)


def _encode_pair_kernel(alpha_ref, a_ref, xw_ref, bg_ref, wh_ref, bh_ref,
                        ha_ref, ca_ref, hn_ref, cn_ref):
    rel = pl.program_id(0)
    hp = ha_ref.shape[-1]
    mm_dt = a_ref.dtype
    alpha = alpha_ref[rel]                       # per-relation PReLU slope
    bg = bg_ref[0]                               # (1, Hp)
    wh = wh_ref[...]                             # (Hp, Hp + Kp)   fused [Ws | Wc]
    bh = bh_ref[...]                             # (1, Hp + Kp)    fused [bs | bc]

    # One A-tile load feeds both variants: (TM, N) @ (N, 2*Hp), f32 accumulate.
    z2 = jnp.dot(a_ref[0], xw_ref[0], preferred_element_type=jnp.float32)

    def heads(z, h_out, c_out):
        z = z + bg
        z = jnp.where(z > 0, z, alpha * z)       # PReLU
        u = jnp.dot(z.astype(mm_dt), wh, preferred_element_type=jnp.float32) + bh
        # Structure head: ELU (padded columns stay exactly 0).
        h_out[0] = _elu(u[:, :hp])
        # Semantic head: softmax (padded columns carry -1e30 bias -> exact 0).
        logits = u[:, hp:]
        m = jnp.max(logits, axis=-1, keepdims=True)
        e = jnp.exp(logits - m)
        c_out[0] = e * pl.reciprocal(jnp.sum(e, axis=-1, keepdims=True),
                                     approx=True)

    heads(z2[:, :hp], ha_ref, ca_ref)            # anchor
    heads(z2[:, hp:], hn_ref, cn_ref)            # negative


def _encode_pair(alpha_all, adj_stack, xw_an, bg_all, w_heads, b_heads,
                 hp, kp, tile, vmem_limit):
    L, N, _ = adj_stack.shape
    grid = (L, N // tile)
    in_specs = [
        SMEM_SPEC,                                                     # alpha (L,)
        pl.BlockSpec((1, tile, N), lambda l, r: (l, r, 0)),            # adjacency
        pl.BlockSpec((1, N, 2 * hp), lambda l, r: (l, 0, 0)),          # [XW | XnW]
        pl.BlockSpec((1, 1, hp), lambda l, r: (l, 0, 0)),              # bg
        pl.BlockSpec((hp, hp + kp), lambda l, r: (0, 0)),              # [Ws | Wc]
        pl.BlockSpec((1, hp + kp), lambda l, r: (0, 0)),               # [bs | bc]
    ]
    out_specs = (
        pl.BlockSpec((1, tile, hp), lambda l, r: (l, r, 0)),           # h_anchor
        pl.BlockSpec((1, tile, kp), lambda l, r: (l, r, 0)),           # c_anchor
        pl.BlockSpec((1, tile, hp), lambda l, r: (l, r, 0)),           # h_neg
        pl.BlockSpec((1, tile, kp), lambda l, r: (l, r, 0)),           # c_neg
    )
    out_shape = (
        jax.ShapeDtypeStruct((L, N, hp), jnp.float32),
        jax.ShapeDtypeStruct((L, N, kp), jnp.float32),
        jax.ShapeDtypeStruct((L, N, hp), jnp.float32),
        jax.ShapeDtypeStruct((L, N, kp), jnp.float32),
    )
    return pl.pallas_call(
        _encode_pair_kernel,
        grid=grid,
        in_specs=in_specs,
        out_specs=out_specs,
        out_shape=out_shape,
        compiler_params=pltpu.CompilerParams(
            dimension_semantics=("parallel", "parallel"),
            vmem_limit_bytes=vmem_limit),
    )(alpha_all, adj_stack, xw_an, bg_all, w_heads, b_heads)


# ----------------------------------------------------------------------------
# Kernel 2: positive variant (structure head only).  grid = (relation, row_tile)
# ----------------------------------------------------------------------------
def _encode_pos_kernel(alpha_ref, a_ref, xw_ref, bg_ref, ws_ref, bs_ref, h_ref):
    rel = pl.program_id(0)
    mm_dt = a_ref.dtype
    z = jnp.dot(a_ref[0], xw_ref[0], preferred_element_type=jnp.float32)
    z = z + bg_ref[0]
    alpha = alpha_ref[rel]
    z = jnp.where(z > 0, z, alpha * z)
    s = jnp.dot(z.astype(mm_dt), ws_ref[...],
                preferred_element_type=jnp.float32) + bs_ref[...]
    h_ref[0] = _elu(s)


def _encode_pos(alpha_all, adj_pos_stack, xw_p, bg_all, ws_pad, bs_pad,
                hp, tile, vmem_limit):
    L, N, _ = adj_pos_stack.shape
    grid = (L, N // tile)
    in_specs = [
        SMEM_SPEC,
        pl.BlockSpec((1, tile, N), lambda l, r: (l, r, 0)),
        pl.BlockSpec((1, N, hp), lambda l, r: (l, 0, 0)),
        pl.BlockSpec((1, 1, hp), lambda l, r: (l, 0, 0)),
        pl.BlockSpec((hp, hp), lambda l, r: (0, 0)),
        pl.BlockSpec((1, hp), lambda l, r: (0, 0)),
    ]
    return pl.pallas_call(
        _encode_pos_kernel,
        grid=grid,
        in_specs=in_specs,
        out_specs=pl.BlockSpec((1, tile, hp), lambda l, r: (l, r, 0)),
        out_shape=jax.ShapeDtypeStruct((L, N, hp), jnp.float32),
        compiler_params=pltpu.CompilerParams(
            dimension_semantics=("parallel", "parallel"),
            vmem_limit_bytes=vmem_limit),
    )(alpha_all, adj_pos_stack, xw_p, bg_all, ws_pad, bs_pad)


# ----------------------------------------------------------------------------
# Kernel 3: all contrastive + entropy losses, row-tiled over N with cross-tile
# accumulators.  grid = (N // TN,)  ("arbitrary": sequential accumulation)
# ----------------------------------------------------------------------------
def _softplus(d):
    # -log(sp / (sp + sn)) == softplus((cos_n - cos_p)/t), stable form.
    return jnp.maximum(d, 0.0) + jnp.log(1.0 + jnp.exp(-jnp.abs(d)))


def _losses_kernel(L, k_real, n_total,
                   t_ref, h_ref, hn_ref, hp_ref, c_ref, cn_ref, out_ref,
                   csum_ref, cn2_ref, cnn2_ref, cnd_ref, cpd_ref):
    r = pl.program_id(0)
    last = pl.num_programs(0) - 1
    kp = c_ref.shape[-1]
    inv_t = 1.0 / t_ref[0]

    def rnorm(x):  # row-wise L2 normalize (matches per-norm eps clamp)
        nrm = jnp.sqrt(jnp.sum(x * x, axis=-1, keepdims=True))
        return x * pl.reciprocal(jnp.maximum(nrm, EPS), approx=True)

    @pl.when(r == 0)
    def _init():
        out_ref[0] = jnp.float32(0.0)
        out_ref[1] = jnp.float32(0.0)
        out_ref[2] = jnp.float32(0.0)
        out_ref[3] = jnp.float32(0.0)
        csum_ref[...] = jnp.zeros_like(csum_ref)
        cn2_ref[...] = jnp.zeros_like(cn2_ref)
        cnn2_ref[...] = jnp.zeros_like(cnn2_ref)
        cnd_ref[...] = jnp.zeros_like(cnd_ref)
        cpd_ref[...] = jnp.zeros_like(cpd_ref)

    # --- node losses: row-separable inside this row tile ---------------------
    h_hat = [rnorm(h_ref[i]) for i in range(L)]
    loss_n_part = jnp.float32(0.0)
    loss_nv_part = jnp.float32(0.0)
    for i in range(L):
        nr = jnp.sum(rnorm(hn_ref[i]) * h_hat[i], axis=-1, keepdims=True)   # cos(h_neg, h)
        pr = jnp.sum(rnorm(hp_ref[i]) * h_hat[i], axis=-1, keepdims=True)   # cos(h_pos, h)
        loss_n_part = loss_n_part + jnp.sum(_softplus((nr - pr) * inv_t))
        for j in range(L):
            if j == i:
                continue
            cij = jnp.sum(h_hat[j] * h_hat[i], axis=-1, keepdims=True)
            loss_nv_part = loss_nv_part + jnp.sum(_softplus((nr - cij) * inv_t))
    out_ref[0] += loss_n_part
    out_ref[1] += loss_nv_part

    # --- column statistics for cluster / entropy losses (cross-tile acc) -----
    for i in range(L):
        ci = c_ref[i]                                   # (TN, Kp)
        cni = cn_ref[i]
        csum_ref[i] += jnp.sum(ci, axis=0, keepdims=True)
        cn2_ref[i] += jnp.sum(ci * ci, axis=0, keepdims=True)
        cnn2_ref[i] += jnp.sum(cni * cni, axis=0, keepdims=True)
        cnd_ref[i] += jnp.sum(cni * ci, axis=0, keepdims=True)
        for j in range(L):
            if j == i:
                continue
            cpd_ref[i * L + j] += jnp.sum(ci * c_ref[j], axis=0, keepdims=True)

    @pl.when(r == last)
    def _finalize():
        col_mask = jax.lax.broadcasted_iota(jnp.int32, (1, kp), 1) < k_real
        inv_n = 1.0 / n_total
        pair_inv = 1.0 / (max(L - 1, 1) * n_total)
        loss_cv = jnp.float32(0.0)
        loss_c = jnp.float32(0.0)
        for i in range(L):
            n_i = jnp.maximum(jnp.sqrt(cn2_ref[i]), EPS)
            nn_i = jnp.maximum(jnp.sqrt(cnn2_ref[i]), EPS)
            cos_neg = cnd_ref[i] * pl.reciprocal(nn_i * n_i, approx=True)
            for j in range(L):
                if j == i:
                    continue
                n_j = jnp.maximum(jnp.sqrt(cn2_ref[j]), EPS)
                cos_pos = cpd_ref[i * L + j] * pl.reciprocal(n_j * n_i, approx=True)
                s = _softplus((cos_neg - cos_pos) * inv_t)
                loss_cv = loss_cv + jnp.sum(jnp.where(col_mask, s, 0.0))
            pros = csum_ref[i] * inv_n
            ent = pros * jnp.log(jnp.maximum(pros, 1e-30))
            loss_c = loss_c - jnp.sum(jnp.where(col_mask, ent, 0.0)) * (1.0 / k_real)
        out_ref[0] = out_ref[0] * inv_n
        out_ref[1] = out_ref[1] * pair_inv
        out_ref[2] = loss_c
        out_ref[3] = loss_cv * pair_inv


def _fused_losses(h_anc, h_neg, h_pos, c_anc, c_neg, t_arr, k_real, tile,
                  vmem_limit):
    L, N, hp = h_anc.shape
    kp = c_anc.shape[-1]
    blk_h = pl.BlockSpec((L, tile, hp), lambda r: (0, r, 0))
    blk_c = pl.BlockSpec((L, tile, kp), lambda r: (0, r, 0))
    out = pl.pallas_call(
        functools.partial(_losses_kernel, L, int(k_real), float(N)),
        grid=(N // tile,),
        in_specs=[SMEM_SPEC, blk_h, blk_h, blk_h, blk_c, blk_c],
        out_specs=SMEM_SPEC,
        out_shape=jax.ShapeDtypeStruct((4,), jnp.float32),
        scratch_shapes=[
            pltpu.VMEM((L, 1, kp), jnp.float32),        # column sums of c
            pltpu.VMEM((L, 1, kp), jnp.float32),        # ||c||^2 per column
            pltpu.VMEM((L, 1, kp), jnp.float32),        # ||c_neg||^2 per column
            pltpu.VMEM((L, 1, kp), jnp.float32),        # <c_neg, c> per column
            pltpu.VMEM((L * L, 1, kp), jnp.float32),    # <c_i, c_j> per column
        ],
        compiler_params=pltpu.CompilerParams(
            dimension_semantics=("arbitrary",),
            vmem_limit_bytes=vmem_limit),
    )(t_arr, h_anc, h_neg, h_pos, c_anc, c_neg)
    return out[0], out[1], out[2], out[3]


# ----------------------------------------------------------------------------
# Parameter init and forward-pass glue.
# ----------------------------------------------------------------------------
def _xavier(key, shape):
    fan_in, fan_out = shape
    a = jnp.sqrt(6.0 / (fan_in + fan_out))
    return jax.random.uniform(key, shape, jnp.float32, -a, a)


def init_params(key, ft_size, hid_units, n_networks, k):
    keys = jax.random.split(key, n_networks + 2)
    gcn = []
    for i in range(n_networks):
        wg = _xavier(keys[i], (ft_size, hid_units))
        bg = jnp.zeros((1, hid_units), jnp.float32)
        alpha = jnp.array([0.25], jnp.float32)          # PReLU default
        gcn.append((alpha, wg, bg))
    ws = _xavier(keys[n_networks], (hid_units, hid_units))
    bs = jnp.zeros((1, hid_units), jnp.float32)
    wc = _xavier(keys[n_networks + 1], (hid_units, k))
    bc = jnp.zeros((1, k), jnp.float32)
    return {"gcn": gcn, "str": (ws, bs), "sem": (wc, bc)}


def _as_stack(x):
    if isinstance(x, (list, tuple)):
        return jnp.stack(list(x))
    return jnp.asarray(x)


def modeler_forward(params, features, features_pos, features_neg,
                    adj_list, adj_pos_list, t,
                    matmul_dtype=jnp.bfloat16, encode_tile=None, loss_tile=None):
    """Forward of `modeler` -> (loss_n, loss_n_v, loss_c, loss_c_v).

    matmul_dtype=jnp.bfloat16 (default) streams the adjacency / X@Wg in bf16
    with f32 accumulation (the encode kernels are HBM-bound on A); pass
    jnp.float32 for closer-to-reference numerics.  For training loops, pre-stack
    (and pre-cast) the adjacency lists outside the jitted step so the (L,N,N)
    copies are not rebuilt every iteration.
    """
    ws, bs = params["str"]
    wc, bc = params["sem"]
    H = ws.shape[0]
    K = wc.shape[1]
    L = len(params["gcn"])
    N, _ = features.shape
    Hp = _round_up(H, LANE)
    Kp = _round_up(K, LANE)
    mm = matmul_dtype
    mm_bytes = jnp.dtype(mm).itemsize
    vmem_limit, budget = _vmem_limits()

    # ---- pack / pad parameters (lane-dense Hp / Kp layout) -------------------
    alpha_all = jnp.stack([params["gcn"][i][0][0] for i in range(L)]).astype(jnp.float32)
    wg_all = jnp.stack([jnp.pad(params["gcn"][i][1], ((0, 0), (0, Hp - H)))
                        for i in range(L)]).astype(jnp.float32)          # (L, F, Hp)
    bg_all = jnp.stack([jnp.pad(params["gcn"][i][2], ((0, 0), (0, Hp - H)))
                        for i in range(L)]).astype(jnp.float32)          # (L, 1, Hp)

    w_heads = jnp.zeros((Hp, Hp + Kp), jnp.float32)
    w_heads = w_heads.at[:H, :H].set(ws)
    w_heads = w_heads.at[:H, Hp:Hp + K].set(wc)                          # [Ws | Wc]
    b_heads = jnp.concatenate(
        [jnp.pad(bs, ((0, 0), (0, Hp - H))),
         jnp.concatenate([bc, jnp.full((1, Kp - K), NEG_INF, jnp.float32)], axis=1)],
        axis=1)                                                          # (1, Hp+Kp)
    ws_pad = jnp.zeros((Hp, Hp), jnp.float32).at[:H, :H].set(ws)
    bs_pad = jnp.pad(bs, ((0, 0), (0, Hp - H)))

    # ---- inputs ---------------------------------------------------------------
    adj_stack = _as_stack(adj_list).astype(mm)                           # (L, N, N)
    adj_pos_stack = _as_stack(adj_pos_list).astype(mm)                   # (L, N, N)

    # X @ Wg precomputed once (tiny vs the A matmuls); HIGHEST precision so the
    # f32 path stays faithful to the reference.
    x_stack = jnp.stack([features, features_neg, features_pos]).astype(jnp.float32)
    xw = jnp.einsum("vnf,lfh->lvnh", x_stack, wg_all,
                    precision=jax.lax.Precision.HIGHEST)                 # (L, 3, N, Hp)
    xw_an = jnp.concatenate([xw[:, 0], xw[:, 1]], axis=-1).astype(mm)    # (L, N, 2Hp)
    xw_p = xw[:, 2].astype(mm)                                           # (L, N, Hp)

    # ---- encode (anchor+neg fused, then pos) ----------------------------------
    tm_pair = encode_tile or _encode_tile(N, Hp, Kp, 2, mm_bytes, budget)
    tm_pos = encode_tile or _encode_tile(N, Hp, 0, 1, mm_bytes, budget)
    h_anc, c_anc, h_neg, c_neg = _encode_pair(
        alpha_all, adj_stack, xw_an, bg_all,
        w_heads.astype(mm), b_heads, Hp, Kp, tm_pair, vmem_limit)
    h_pos = _encode_pos(
        alpha_all, adj_pos_stack, xw_p, bg_all,
        ws_pad.astype(mm), bs_pad, Hp, tm_pos, vmem_limit)

    # ---- losses ---------------------------------------------------------------
    tn = loss_tile or _loss_tile(N, L, Hp, Kp, budget)
    t_arr = jnp.asarray([t], jnp.float32)
    return _fused_losses(h_anc, h_neg, h_pos, c_anc, c_neg, t_arr, K, tn, vmem_limit)


# ----------------------------------------------------------------------------
# Pure-JAX reference (numerical sanity check; run under HIGHEST precision).
# ----------------------------------------------------------------------------
def _cos_ref(a, b, axis):
    na = jnp.maximum(jnp.sqrt(jnp.sum(a * a, axis=axis)), EPS)
    nb = jnp.maximum(jnp.sqrt(jnp.sum(b * b, axis=axis)), EPS)
    return jnp.sum(a * b, axis=axis) / (na * nb)


def _encode_ref(x, adj, alpha, wg, bg, ws, bs, wc, bc):
    z = adj @ (x @ wg) + bg
    z = jnp.where(z > 0, z, alpha[0] * z)
    s = z @ ws + bs
    h = jnp.where(s > 0, s, jnp.exp(jnp.minimum(s, 0.0)) - 1.0)
    c = jax.nn.softmax(z @ wc + bc, axis=-1)
    return h, c


def modeler_forward_ref(params, features, features_pos, features_neg,
                        adj_list, adj_pos_list, t):
    ws, bs = params["str"]
    wc, bc = params["sem"]
    N = features.shape[0]
    L = len(adj_list)

    def csum(pos, anc, neg, axis):
        sp = jnp.exp(_cos_ref(pos, anc, axis) / t)
        sn = jnp.exp(_cos_ref(neg, anc, axis) / t)
        return -jnp.sum(jnp.log(sp / (sp + sn)))

    h_list, h_neg_list, c_list, c_neg_list = [], [], [], []
    loss_n = 0.0
    for i, adj in enumerate(adj_list):
        alpha, wg, bg = params["gcn"][i]
        h, c = _encode_ref(features, adj, alpha, wg, bg, ws, bs, wc, bc)
        h_neg, c_neg = _encode_ref(features_neg, adj, alpha, wg, bg, ws, bs, wc, bc)
        h_pos, _ = _encode_ref(features_pos, adj_pos_list[i], alpha, wg, bg, ws, bs, wc, bc)
        h_list.append(h); c_list.append(c)
        h_neg_list.append(h_neg); c_neg_list.append(c_neg)
        loss_n = loss_n + csum(h_pos, h, h_neg, -1) / N

    s = 0.0
    for i in range(L):
        for j in range(L):
            if i != j:
                s = s + csum(h_list[j], h_list[i], h_neg_list[i], -1)
    loss_n_v = s / ((L - 1) * N)

    s = 0.0
    for i in range(L):
        for j in range(L):
            if i != j:
                s = s + csum(c_list[j], c_list[i], c_neg_list[i], 0)
    loss_c_v = s / ((L - 1) * N)

    loss_c = 0.0
    for c in c_list:
        pros = jnp.sum(c, axis=0) / c.shape[0]
        loss_c = loss_c + (-jnp.sum(pros * jnp.log(pros)) / c.shape[1])

    return loss_n, loss_n_v, loss_c, loss_c_v


# ----------------------------------------------------------------------------
if __name__ == "__main__":
    def make_adj(kk, n):
        a = (jax.random.uniform(kk, (n, n)) > 0.5).astype(jnp.float32)
        a = jnp.minimum(a + a.T + jnp.eye(n, dtype=jnp.float32), 1.0)
        return a / jnp.sum(a, axis=1, keepdims=True)

    def run_case(N, F, H, K, L, t, seed, matmul_dtype, atol, rtol,
                 encode_tile=None, loss_tile=None):
        key = jax.random.PRNGKey(seed)
        k1, k2, k3, k4, kp = jax.random.split(key, 5)
        features = jax.random.normal(k1, (N, F), jnp.float32)
        features_pos = features + 0.1 * jax.random.normal(k2, (N, F), jnp.float32)
        features_neg = jax.random.permutation(k3, features, axis=0)
        ak = jax.random.split(k4, 2 * L)
        adj_list = [make_adj(ak[2 * i], N) for i in range(L)]
        adj_pos_list = [make_adj(ak[2 * i + 1], N) for i in range(L)]
        params = init_params(kp, F, H, L, K)

        losses = modeler_forward(params, features, features_pos, features_neg,
                                 adj_list, adj_pos_list, t,
                                 matmul_dtype=matmul_dtype,
                                 encode_tile=encode_tile, loss_tile=loss_tile)
        losses = jax.block_until_ready(losses)

        with jax.default_matmul_precision("highest"):
            ref = modeler_forward_ref(params, features, features_pos, features_neg,
                                      adj_list, adj_pos_list, t)
            ref = jax.block_until_ready(ref)

        for got, want in zip(losses, ref):
            g, w = float(got), float(want)
            assert math.isfinite(g), (g, w)
            assert abs(g - w) <= atol + rtol * abs(w), (g, w)

    # 1) Small config (PRNGKey(0)), f32 streaming, single row tile.
    run_case(N=16, F=16, H=32, K=4, L=2, t=0.5, seed=0,
             matmul_dtype=jnp.float32, atol=2e-2, rtol=5e-2)

    # 2) Multi-tile path: forced small tiles -> R>1 row grid in both the encode
    #    kernels and the accumulating loss kernel, 3 relations, f32 streaming.
    run_case(N=128, F=48, H=64, K=6, L=3, t=0.5, seed=1,
             matmul_dtype=jnp.float32, atol=2e-2, rtol=5e-2,
             encode_tile=32, loss_tile=32)

    # 3) bf16 streaming (recommended HBM-bound perf mode): quantify drift vs the
    #    HIGHEST-precision f32 reference with a looser tolerance.
    run_case(N=128, F=48, H=64, K=6, L=3, t=0.5, seed=1,
             matmul_dtype=jnp.bfloat16, atol=1e-1, rtol=1e-1)

    print("KERNEL_OK")
</pallas_src>

<mosaic_0001>
module attributes {stable_mosaic.version = 11 : i64} {
  func.func @_encode_pair_kernel(%arg0: i32, %arg1: i32, %arg2: memref<2xf32, #tpu.memory_space<smem>>, %arg3: memref<1x16x16xf32, #tpu.memory_space<vmem>>, %arg4: memref<1x16x256xf32, #tpu.memory_space<vmem>>, %arg5: memref<1x1x128xf32, #tpu.memory_space<vmem>>, %arg6: memref<128x256xf32, #tpu.memory_space<vmem>>, %arg7: memref<1x256xf32, #tpu.memory_space<vmem>>, %arg8: memref<1x16x128xf32, #tpu.memory_space<vmem>>, %arg9: memref<1x16x128xf32, #tpu.memory_space<vmem>>, %arg10: memref<1x16x128xf32, #tpu.memory_space<vmem>>, %arg11: memref<1x16x128xf32, #tpu.memory_space<vmem>>) attributes {dimension_semantics = [#tpu.dimension_semantics<parallel>, #tpu.dimension_semantics<parallel>], iteration_bounds = array<i64: 2, 1>, scalar_prefetch = 0 : i64, scratch_operands = 0 : i64, tpu.core_type = #tpu.core_type<tc>, window_params = [{transform_indices = @transform_0, window_bounds = array<i64: 2>}, {transform_indices = @transform_1, window_bounds = array<i64: 1, 16, 16>}, {transform_indices = @transform_2, window_bounds = array<i64: 1, 16, 256>}, {transform_indices = @transform_3, window_bounds = array<i64: 1, 1, 128>}, {pipeline_mode = #tpu.pipeline_mode<synchronous>, transform_indices = @transform_4, window_bounds = array<i64: 128, 256>}, {pipeline_mode = #tpu.pipeline_mode<synchronous>, transform_indices = @transform_5, window_bounds = array<i64: 1, 256>}, {transform_indices = @transform_6, window_bounds = array<i64: 1, 16, 128>}, {transform_indices = @transform_7, window_bounds = array<i64: 1, 16, 128>}, {transform_indices = @transform_8, window_bounds = array<i64: 1, 16, 128>}, {transform_indices = @transform_9, window_bounds = array<i64: 1, 16, 128>}]} {
    %0 = arith.index_cast %arg0 : i32 to index
    %1 = memref.load %arg2[%0] : memref<2xf32, #tpu.memory_space<smem>>
    %c0 = arith.constant 0 : index
    %c0_0 = arith.constant 0 : index
    %c0_1 = arith.constant 0 : index
    %2 = vector.load %arg5[%c0, %c0_0, %c0_1] : memref<1x1x128xf32, #tpu.memory_space<vmem>>, vector<1x1x128xf32>
    %3 = vector.shape_cast %2 : vector<1x1x128xf32> to vector<1x128xf32>
    %c0_2 = arith.constant 0 : index
    %c0_3 = arith.constant 0 : index
    %4 = vector.load %arg6[%c0_2, %c0_3] : memref<128x256xf32, #tpu.memory_space<vmem>>, vector<128x256xf32>
    %c0_4 = arith.constant 0 : index
    %c0_5 = arith.constant 0 : index
    %5 = vector.load %arg7[%c0_4, %c0_5] : memref<1x256xf32, #tpu.memory_space<vmem>>, vector<1x256xf32>
    %c0_6 = arith.constant 0 : index
    %c0_7 = arith.constant 0 : index
    %c0_8 = arith.constant 0 : index
    %6 = vector.load %arg3[%c0_6, %c0_7, %c0_8] : memref<1x16x16xf32, #tpu.memory_space<vmem>>, vector<1x16x16xf32>
    %7 = vector.shape_cast %6 : vector<1x16x16xf32> to vector<16x16xf32>
    %c0_9 = arith.constant 0 : index
    %c0_10 = arith.constant 0 : index
    %c0_11 = arith.constant 0 : index
    %8 = vector.load %arg4[%c0_9, %c0_10, %c0_11] : memref<1x16x256xf32, #tpu.memory_space<vmem>>, vector<1x16x256xf32>
    %9 = vector.shape_cast %8 : vector<1x16x256xf32> to vector<16x256xf32>
    %cst = arith.constant dense<0.000000e+00> : vector<16x256xf32>
    %10 = tpu.matmul %7, %9, %cst {dimension_numbers = #tpu.dot_dimension_numbers<[1], [0], [0], [1], [0, 0, 1, 1], [], []>} : vector<16x16xf32>, vector<16x256xf32>, vector<16x256xf32> -> vector<16x256xf32>
    %11 = vector.extract_strided_slice %10 {offsets = [0, 0], sizes = [16, 128], strides = [1, 1]} : vector<16x256xf32> to vector<16x128xf32>
    %12 = vector.broadcast %3 : vector<1x128xf32> to vector<16x128xf32>
    %13 = arith.addf %11, %12 : vector<16x128xf32>
    %cst_12 = arith.constant 0.000000e+00 : f32
    %14 = vector.broadcast %cst_12 : f32 to vector<16x128xf32>
    %15 = arith.cmpf ogt, %13, %14 : vector<16x128xf32>
    %16 = vector.broadcast %1 : f32 to vector<16x128xf32>
    %17 = arith.mulf %16, %13 : vector<16x128xf32>
    %18 = arith.select %15, %13, %17 : vector<16x128xi1>, vector<16x128xf32>
    %cst_13 = arith.constant dense<0.000000e+00> : vector<16x256xf32>
    %19 = tpu.matmul %18, %4, %cst_13 {dimension_numbers = #tpu.dot_dimension_numbers<[1], [0], [0], [1], [0, 0, 1, 1], [], []>} : vector<16x128xf32>, vector<128x256xf32>, vector<16x256xf32> -> vector<16x256xf32>
    %20 = vector.broadcast %5 : vector<1x256xf32> to vector<16x256xf32>
    %21 = arith.addf %19, %20 : vector<16x256xf32>
    %22 = vector.extract_strided_slice %21 {offsets = [0, 0], sizes = [16, 128], strides = [1, 1]} : vector<16x256xf32> to vector<16x128xf32>
    %cst_14 = arith.constant 0.000000e+00 : f32
    %23 = vector.broadcast %cst_14 : f32 to vector<16x128xf32>
    %24 = arith.cmpf ogt, %22, %23 : vector<16x128xf32>
    %cst_15 = arith.constant 0.000000e+00 : f32
    %25 = vector.broadcast %cst_15 : f32 to vector<16x128xf32>
    %26 = arith.minimumf %22, %25 : vector<16x128xf32>
    %27 = math.exp %26 : vector<16x128xf32>
    %cst_16 = arith.constant 1.000000e+00 : f32
    %28 = vector.broadcast %cst_16 : f32 to vector<16x128xf32>
    %29 = arith.subf %27, %28 : vector<16x128xf32>
    %30 = arith.select %24, %22, %29 : vector<16x128xi1>, vector<16x128xf32>
    %c0_17 = arith.constant 0 : index
    %c0_18 = arith.constant 0 : index
    %c0_19 = arith.constant 0 : index
    %31 = vector.load %arg8[%c0_17, %c0_18, %c0_19] : memref<1x16x128xf32, #tpu.memory_space<vmem>>, vector<1x16x128xf32>
    %32 = vector.shape_cast %31 : vector<1x16x128xf32> to vector<16x128xf32>
    %33 = vector.shape_cast %30 : vector<16x128xf32> to vector<1x16x128xf32>
    tpu.vector_store %arg8[%c0_17, %c0_18, %c0_19], %33 {strides = array<i32>} : memref<1x16x128xf32, #tpu.memory_space<vmem>>, vector<1x16x128xf32>,
    %34 = vector.extract_strided_slice %21 {offsets = [0, 128], sizes = [16, 128], strides = [1, 1]} : vector<16x256xf32> to vector<16x128xf32>
    %cst_20 = arith.constant dense<0xFF800000> : vector<16xf32>
    %35 = vector.multi_reduction <maximumf>, %34, %cst_20 [1] : vector<16x128xf32> to vector<16xf32>
    %36 = vector.shape_cast %35 : vector<16xf32> to vector<16x1xf32>
    %37 = vector.broadcast %36 : vector<16x1xf32> to vector<16x128xf32>
    %38 = arith.subf %34, %37 : vector<16x128xf32>
    %39 = math.exp %38 : vector<16x128xf32>
    %cst_21 = arith.constant dense<0.000000e+00> : vector<16xf32>
    %40 = vector.multi_reduction <add>, %39, %cst_21 [1] : vector<16x128xf32> to vector<16xf32>
    %41 = vector.shape_cast %40 : vector<16xf32> to vector<16x1xf32>
    %42 = tpu.reciprocal %41 {approx = true} : vector<16x1xf32> -> vector<16x1xf32>
    %43 = vector.broadcast %42 : vector<16x1xf32> to vector<16x128xf32>
    %44 = arith.mulf %39, %43 : vector<16x128xf32>
    %c0_22 = arith.constant 0 : index
    %c0_23 = arith.constant 0 : index
    %c0_24 = arith.constant 0 : index
    %45 = vector.load %arg9[%c0_22, %c0_23, %c0_24] : memref<1x16x128xf32, #tpu.memory_space<vmem>>, vector<1x16x128xf32>
    %46 = vector.shape_cast %45 : vector<1x16x128xf32> to vector<16x128xf32>
    %47 = vector.shape_cast %44 : vector<16x128xf32> to vector<1x16x128xf32>
    tpu.vector_store %arg9[%c0_22, %c0_23, %c0_24], %47 {strides = array<i32>} : memref<1x16x128xf32, #tpu.memory_space<vmem>>, vector<1x16x128xf32>,
    %48 = vector.extract_strided_slice %10 {offsets = [0, 128], sizes = [16, 128], strides = [1, 1]} : vector<16x256xf32> to vector<16x128xf32>
    %49 = vector.broadcast %3 : vector<1x128xf32> to vector<16x128xf32>
    %50 = arith.addf %48, %49 : vector<16x128xf32>
    %cst_25 = arith.constant 0.000000e+00 : f32
    %51 = vector.broadcast %cst_25 : f32 to vector<16x128xf32>
    %52 = arith.cmpf ogt, %50, %51 : vector<16x128xf32>
    %53 = vector.broadcast %1 : f32 to vector<16x128xf32>
    %54 = arith.mulf %53, %50 : vector<16x128xf32>
    %55 = arith.select %52, %50, %54 : vector<16x128xi1>, vector<16x128xf32>
    %cst_26 = arith.constant dense<0.000000e+00> : vector<16x256xf32>
    %56 = tpu.matmul %55, %4, %cst_26 {dimension_numbers = #tpu.dot_dimension_numbers<[1], [0], [0], [1], [0, 0, 1, 1], [], []>} : vector<16x128xf32>, vector<128x256xf32>, vector<16x256xf32> -> vector<16x256xf32>
    %57 = vector.broadcast %5 : vector<1x256xf32> to vector<16x256xf32>
    %58 = arith.addf %56, %57 : vector<16x256xf32>
    %59 = vector.extract_strided_slice %58 {offsets = [0, 0], sizes = [16, 128], strides = [1, 1]} : vector<16x256xf32> to vector<16x128xf32>
    %cst_27 = arith.constant 0.000000e+00 : f32
    %60 = vector.broadcast %cst_27 : f32 to vector<16x128xf32>
    %61 = arith.cmpf ogt, %59, %60 : vector<16x128xf32>
    %cst_28 = arith.constant 0.000000e+00 : f32
    %62 = vector.broadcast %cst_28 : f32 to vector<16x128xf32>
    %63 = arith.minimumf %59, %62 : vector<16x128xf32>
    %64 = math.exp %63 : vector<16x128xf32>
    %cst_29 = arith.constant 1.000000e+00 : f32
    %65 = vector.broadcast %cst_29 : f32 to vector<16x128xf32>
    %66 = arith.subf %64, %65 : vector<16x128xf32>
    %67 = arith.select %61, %59, %66 : vector<16x128xi1>, vector<16x128xf32>
    %c0_30 = arith.constant 0 : index
    %c0_31 = arith.constant 0 : index
    %c0_32 = arith.constant 0 : index
    %68 = vector.load %arg10[%c0_30, %c0_31, %c0_32] : memref<1x16x128xf32, #tpu.memory_space<vmem>>, vector<1x16x128xf32>
    %69 = vector.shape_cast %68 : vector<1x16x128xf32> to vector<16x128xf32>
    %70 = vector.shape_cast %67 : vector<16x128xf32> to vector<1x16x128xf32>
    tpu.vector_store %arg10[%c0_30, %c0_31, %c0_32], %70 {strides = array<i32>} : memref<1x16x128xf32, #tpu.memory_space<vmem>>, vector<1x16x128xf32>,
    %71 = vector.extract_strided_slice %58 {offsets = [0, 128], sizes = [16, 128], strides = [1, 1]} : vector<16x256xf32> to vector<16x128xf32>
    %cst_33 = arith.constant dense<0xFF800000> : vector<16xf32>
    %72 = vector.multi_reduction <maximumf>, %71, %cst_33 [1] : vector<16x128xf32> to vector<16xf32>
    %73 = vector.shape_cast %72 : vector<16xf32> to vector<16x1xf32>
    %74 = vector.broadcast %73 : vector<16x1xf32> to vector<16x128xf32>
    %75 = arith.subf %71, %74 : vector<16x128xf32>
    %76 = math.exp %75 : vector<16x128xf32>
    %cst_34 = arith.constant dense<0.000000e+00> : vector<16xf32>
    %77 = vector.multi_reduction <add>, %76, %cst_34 [1] : vector<16x128xf32> to vector<16xf32>
    %78 = vector.shape_cast %77 : vector<16xf32> to vector<16x1xf32>
    %79 = tpu.reciprocal %78 {approx = true} : vector<16x1xf32> -> vector<16x1xf32>
    %80 = vector.broadcast %79 : vector<16x1xf32> to vector<16x128xf32>
    %81 = arith.mulf %76, %80 : vector<16x128xf32>
    %c0_35 = arith.constant 0 : index
    %c0_36 = arith.constant 0 : index
    %c0_37 = arith.constant 0 : index
    %82 = vector.load %arg11[%c0_35, %c0_36, %c0_37] : memref<1x16x128xf32, #tpu.memory_space<vmem>>, vector<1x16x128xf32>
    %83 = vector.shape_cast %82 : vector<1x16x128xf32> to vector<16x128xf32>
    %84 = vector.shape_cast %81 : vector<16x128xf32> to vector<1x16x128xf32>
    tpu.vector_store %arg11[%c0_35, %c0_36, %c0_37], %84 {strides = array<i32>} : memref<1x16x128xf32, #tpu.memory_space<vmem>>, vector<1x16x128xf32>,
    return
  }
  func.func @transform_0(%arg0: i32, %arg1: i32) -> i32 {
    %c0_i32 = arith.constant 0 : i32
    %c0_i32_0 = arith.constant 0 : i32
    return %c0_i32 : i32
  }
  func.func @transform_1(%arg0: i32, %arg1: i32) -> (i32, i32, i32) {
    %c0_i32 = arith.constant 0 : i32
    %c0_i32_0 = arith.constant 0 : i32
    return %arg0, %arg1, %c0_i32 : i32, i32, i32
  }
  func.func @transform_2(%arg0: i32, %arg1: i32) -> (i32, i32, i32) {
    %c0_i32 = arith.constant 0 : i32
    %c0_i32_0 = arith.constant 0 : i32
    %c0_i32_1 = arith.constant 0 : i32
    return %arg0, %c0_i32, %c0_i32_0 : i32, i32, i32
  }
  func.func @transform_3(%arg0: i32, %arg1: i32) -> (i32, i32, i32) {
    %c0_i32 = arith.constant 0 : i32
    %c0_i32_0 = arith.constant 0 : i32
    %c0_i32_1 = arith.constant 0 : i32
    return %arg0, %c0_i32, %c0_i32_0 : i32, i32, i32
  }
  func.func @transform_4(%arg0: i32, %arg1: i32) -> (i32, i32) {
    %c0_i32 = arith.constant 0 : i32
    %c0_i32_0 = arith.constant 0 : i32
    %c0_i32_1 = arith.constant 0 : i32
    return %c0_i32, %c0_i32_0 : i32, i32
  }
  func.func @transform_5(%arg0: i32, %arg1: i32) -> (i32, i32) {
    %c0_i32 = arith.constant 0 : i32
    %c0_i32_0 = arith.constant 0 : i32
    %c0_i32_1 = arith.constant 0 : i32
    return %c0_i32, %c0_i32_0 : i32, i32
  }
  func.func @transform_6(%arg0: i32, %arg1: i32) -> (i32, i32, i32) {
    %c0_i32 = arith.constant 0 : i32
    %c0_i32_0 = arith.constant 0 : i32
    return %arg0, %arg1, %c0_i32 : i32, i32, i32
  }
  func.func @transform_7(%arg0: i32, %arg1: i32) -> (i32, i32, i32) {
    %c0_i32 = arith.constant 0 : i32
    %c0_i32_0 = arith.constant 0 : i32
    return %arg0, %arg1, %c0_i32 : i32, i32, i32
  }
  func.func @transform_8(%arg0: i32, %arg1: i32) -> (i32, i32, i32) {
    %c0_i32 = arith.constant 0 : i32
    %c0_i32_0 = arith.constant 0 : i32
    return %arg0, %arg1, %c0_i32 : i32, i32, i32
  }
  func.func @transform_9(%arg0: i32, %arg1: i32) -> (i32, i32, i32) {
    %c0_i32 = arith.constant 0 : i32
    %c0_i32_0 = arith.constant 0 : i32
    return %arg0, %arg1, %c0_i32 : i32, i32, i32
  }
}

</mosaic_0001>

<llo_original>
// kernel: tpu_custom_call.1
$region0: #{tpu_custom_call.1}
  #allocation0 [shape = 'u32[]', space=smem, size = 0x4, offset = 0x4, fixed_abs, tag = 'smem constant byte address 0x4 - core index']
  #allocation1 [shape = 'u32[72,128]{1,0:T(1,128)}', space=vmem, size = 0x9000, scoped, tag = 'internal scratch']
  %s0 = inlined_call_operand.hbm [shape: f32[2], index: 0, kind: input, shape index: {}]
  %s1 = inlined_call_operand.hbm [shape: f32[2,16,16], index: 1, kind: input, shape index: {}]
  %s2 = inlined_call_operand.hbm [shape: f32[2,16,256], index: 2, kind: input, shape index: {}]
  %s3 = inlined_call_operand.vmem [shape: f32[2,1,128], index: 3, kind: input, shape index: {}]
  %s4 = inlined_call_operand.hbm [shape: f32[128,256], index: 4, kind: input, shape index: {}]
  %s5 = inlined_call_operand.vmem [shape: f32[1,256], index: 5, kind: input, shape index: {}]
  %s6 = inlined_call_operand.hbm [shape: f32[2,16,128], index: 6, kind: output, shape index: {0}]
  %s7 = inlined_call_operand.hbm [shape: f32[2,16,128], index: 7, kind: output, shape index: {1}]
  %s8 = inlined_call_operand.hbm [shape: f32[2,16,128], index: 8, kind: output, shape index: {2}]
  %s9 = inlined_call_operand.hbm [shape: f32[2,16,128], index: 9, kind: output, shape index: {3}]
  %10 = xla_tuple %s6, %s7, %s8, %s9
  %s11 = sld [smem:[#allocation0]]
  $region97: #{tpu_custom_call.1} parent=0
    _
  %s13 = ssub.s32 1, %s11
  %s14 = scalar_select 0, %s13, %s11
  $region1: #{tpu_custom_call.1} parent=0
    #allocation2 [shape = 'u8[512]{0}', space=smem, size = 0x200, scoped, tag = 'input window, operand 0, single buffered']
    #allocation3 [shape = 's32[2]{0}', space=sflag, size = 0x8, scoped, tag = 'scoped memory for tpu_custom_call.1']
    #allocation4 [shape = 's32[2]{0}', space=sflag, size = 0x8, scoped, tag = 'scoped memory for tpu_custom_call.1']
    #allocation5 [shape = 's32[2]{0}', space=sflag, size = 0x8, scoped, tag = 'scoped memory for tpu_custom_call.1']
    #allocation6 [shape = 'u8[16384]{0}', space=vmem, size = 0x4000, scoped, tag = 'input window, operand 1']
    #allocation7 [shape = 'u8[32768]{0}', space=vmem, size = 0x8000, scoped, tag = 'input window, operand 2']
    #allocation8 [shape = 's32[2]{0}', space=sflag, size = 0x8, scoped, tag = 'scoped memory for tpu_custom_call.1']
    #allocation9 [shape = 'u8[131072]{0}', space=vmem, size = 0x20000, scoped, tag = 'input window, operand 4, single buffered']
    #allocation10 [shape = 'u8[16384]{0}', space=vmem, size = 0x4000, scoped, tag = 'output window, operand 0']
    #allocation11 [shape = 'u8[16384]{0}', space=vmem, size = 0x4000, scoped, tag = 'output window, operand 1']
    #allocation12 [shape = 's32[2]{0}', space=sflag, size = 0x8, scoped, tag = 'scoped memory for tpu_custom_call.1']
    #allocation13 [shape = 'u8[16384]{0}', space=vmem, size = 0x4000, scoped, tag = 'output window, operand 2']
    #allocation14 [shape = 'u8[16384]{0}', space=vmem, size = 0x4000, scoped, tag = 'output window, operand 3']
    #allocation15 [shape = 's32[2]{0}', space=sflag, size = 0x8, scoped, tag = 'scoped memory for tpu_custom_call.1']
    %15 = vsyncpa [#allocation5], 0
    %16 = vsyncpa [#allocation3], 0
    %s17 = scalar_lea.sflag [#allocation3], 1
    %18 = vsyncpa %s17, 0
    %19 = vsyncpa [#allocation8], 0
    %s20 = scalar_lea.sflag [#allocation8], 1
    %21 = vsyncpa %s20, 0
    %22 = vsyncpa [#allocation4], 0
    %s23 = scalar_lea.sflag [#allocation4], 1
    %24 = vsyncpa %s23, 0
    %25 = vsyncpa [#allocation12], 0
    %s26 = scalar_lea.sflag [#allocation12], 1
    %27 = vsyncpa %s26, 0
    %28 = vsyncpa [#allocation15], 0
    %s29 = scalar_lea.sflag [#allocation15], 1
    %30 = vsyncpa %s29, 0
    loop: start=0, step=1, limit=4
    $region2: #{tpu_custom_call.1} parent=1 // loop_pre_header
      _
    $region3: #{tpu_custom_call.1} parent=1 // loop_header
      %s32 = sphi 0, %s36
      %p33 = scmp.ge.s32.totalorder %s32, 4
      %s39 = sphi 0, %s51
      %s40 = sphi 0, %s47
      %s41 = sphi 0, %s39
      %s42 = sphi 0, %s40
      %s43 = sphi 0, %s41
      %s44 = sphi 0, %s42
      %s52 = sphi 0, %s52
      %s54 = sphi 0, %s52
      %s55 = sphi 0, %s54
      %s69 = sphi 0, %s55
      %s77 = sphi 0, %s79
      %s80 = sphi 0, %s77
      %s81 = sphi 0, %s80
      %s97 = sphi 0, %s81
      %s103 = sphi 0, %s105
      %s106 = sphi 0, %s103
      %s107 = sphi 0, %s106
      %s123 = sphi 0, %s107
      %s129 = sphi 0, %s131
      %s132 = sphi 0, %s129
      %s133 = sphi 0, %s132
      %s149 = sphi 0, %s133
      %s153 = sphi 0, %s153
      %s155 = sphi 0, %s153
      %s156 = sphi 0, %s155
      %s170 = sphi 0, %s156
      %s174 = sphi 0, %s174
      %s176 = sphi 0, %s174
      %s177 = sphi 0, %s176
      %s191 = sphi 0, %s177
      %s199 = sphi 0, %s201
      %s202 = sphi 0, %s199
      %s203 = sphi 0, %s202
      %s219 = sphi 0, %s203
      %s227 = sphi 0, %s229
      %s230 = sphi 0, %s227
      %s231 = sphi 0, %s230
      %s247 = sphi 0, %s231
      %s255 = sphi 0, %s257
      %s258 = sphi 0, %s255
      %s259 = sphi 0, %s258
      %s275 = sphi 0, %s259
      %s283 = sphi 0, %s285
      %s286 = sphi 0, %s283
      %s287 = sphi 0, %s286
      %s303 = sphi 0, %s287
    $region4: #{tpu_custom_call.1} parent=1 // loop_header_branch
      %35 = sbr.rel (%p33) target = $region8
    $region5: #{tpu_custom_call.1} parent=1 // loop_body
      %s37 = ssub.s32 %s32, 1
      %s38 = ssub.s32 %s32, 2
      %s45 = sadd.s32 1, %s40
      %p46 = scmp.ge.s32.totalorder %s45, 1
      %s47 = scalar_select %p46, 0, %s45
      %s48 = sadd.s32 1, %s39
      %s49 = scalar_select %p46, %s48, %s39
      %p50 = scmp.ge.s32.totalorder %s49, 2
      %s51 = scalar_select %p50, 0, %s49
      %s53 = sadd.s32 %s52, 1
      %p56 = scmp.eq.s32.totalorder %s32, 1
      %p57 = scmp.ne.s32.totalorder %s52, %s54
      %p58 = scmp.eq.s32.totalorder %s32, 0
      %p59 = por %p57, %p58
      %p60 = scmp.ne.s32.totalorder %s52, %s54
      %p61 = scmp.eq.s32.totalorder %s37, 1
      %p62 = por %p60, %p61
      %p63 = scmp.ne.s32.totalorder %s54, %s55
      %p64 = scmp.eq.s32.totalorder %s37, 0
      %p65 = por %p63, %p64
      %p66 = scmp.ne.s32.totalorder %s54, %s55
      %p67 = scmp.eq.s32.totalorder %s38, 1
      %p68 = por %p66, %p67
      %p70 = scmp.ne.s32.totalorder %s55, %s69
      %p71 = scmp.eq.s32.totalorder %s38, 0
      %p72 = por %p70, %p71
      %s73 = ssub.s32 %s39, %s51
      %s74 = ssub.s32 %s40, %s47
      %s75 = sor.u32 %s73, %s74
      %p76 = scmp.eq.s32.totalorder %s75, 0
      %s78 = sadd.s32 %s77, 1
      %s79 = scalar_select %p76, %s77, %s78
      %p82 = pneg %p76
      %p83 = scmp.eq.s32.totalorder %s32, 1
      %p84 = por %p82, %p83
      %p85 = scmp.ne.s32.totalorder %s77, %s80
      %p86 = scmp.eq.s32.totalorder %s32, 0
      %p87 = por %p85, %p86
      %p88 = scmp.ne.s32.totalorder %s77, %s80
      %p89 = scmp.eq.s32.totalorder %s37, 1
      %p90 = por %p88, %p89
      %p91 = scmp.ne.s32.totalorder %s80, %s81
      %p92 = scmp.eq.s32.totalorder %s37, 0
      %p93 = por %p91, %p92
      %p94 = scmp.ne.s32.totalorder %s80, %s81
      %p95 = scmp.eq.s32.totalorder %s38, 1
      %p96 = por %p94, %p95
      %p98 = scmp.ne.s32.totalorder %s81, %s97
      %p99 = scmp.eq.s32.totalorder %s38, 0
      %p100 = por %p98, %p99
      %s101 = ssub.s32 %s39, %s51
      %p102 = scmp.eq.s32.totalorder %s101, 0
      %s104 = sadd.s32 %s103, 1
      %s105 = scalar_select %p102, %s103, %s104
      %p108 = pneg %p102
      %p109 = scmp.eq.s32.totalorder %s32, 1
      %p110 = por %p108, %p109
      %p111 = scmp.ne.s32.totalorder %s103, %s106
      %p112 = scmp.eq.s32.totalorder %s32, 0
      %p113 = por %p111, %p112
      %p114 = scmp.ne.s32.totalorder %s103, %s106
      %p115 = scmp.eq.s32.totalorder %s37, 1
      %p116 = por %p114, %p115
      %p117 = scmp.ne.s32.totalorder %s106, %s107
      %p118 = scmp.eq.s32.totalorder %s37, 0
      %p119 = por %p117, %p118
      %p120 = scmp.ne.s32.totalorder %s106, %s107
      %p121 = scmp.eq.s32.totalorder %s38, 1
      %p122 = por %p120, %p121
      %p124 = scmp.ne.s32.totalorder %s107, %s123
      %p125 = scmp.eq.s32.totalorder %s38, 0
      %p126 = por %p124, %p125
      %s127 = ssub.s32 %s39, %s51
      %p128 = scmp.eq.s32.totalorder %s127, 0
      %s130 = sadd.s32 %s129, 1
      %s131 = scalar_select %p128, %s129, %s130
      %p134 = pneg %p128
      %p135 = scmp.eq.s32.totalorder %s32, 1
      %p136 = por %p134, %p135
      %p137 = scmp.ne.s32.totalorder %s129, %s132
      %p138 = scmp.eq.s32.totalorder %s32, 0
      %p139 = por %p137, %p138
      %p140 = scmp.ne.s32.totalorder %s129, %s132
      %p141 = scmp.eq.s32.totalorder %s37, 1
      %p142 = por %p140, %p141
      %p143 = scmp.ne.s32.totalorder %s132, %s133
      %p144 = scmp.eq.s32.totalorder %s37, 0
      %p145 = por %p143, %p144
      %p146 = scmp.ne.s32.totalorder %s132, %s133
      %p147 = scmp.eq.s32.totalorder %s38, 1
      %p148 = por %p146, %p147
      %p150 = scmp.ne.s32.totalorder %s133, %s149
      %p151 = scmp.eq.s32.totalorder %s38, 0
      %p152 = por %p150, %p151
      %s154 = sadd.s32 %s153, 1
      %p157 = scmp.eq.s32.totalorder %s32, 1
      %p158 = scmp.ne.s32.totalorder %s153, %s155
      %p159 = scmp.eq.s32.totalorder %s32, 0
      %p160 = por %p158, %p159
      %p161 = scmp.ne.s32.totalorder %s153, %s155
      %p162 = scmp.eq.s32.totalorder %s37, 1
      %p163 = por %p161, %p162
      %p164 = scmp.ne.s32.totalorder %s155, %s156
      %p165 = scmp.eq.s32.totalorder %s37, 0
      %p166 = por %p164, %p165
      %p167 = scmp.ne.s32.totalorder %s155, %s156
      %p168 = scmp.eq.s32.totalorder %s38, 1
      %p169 = por %p167, %p168
      %p171 = scmp.ne.s32.totalorder %s156, %s170
      %p172 = scmp.eq.s32.totalorder %s38, 0
      %p173 = por %p171, %p172
      %s175 = sadd.s32 %s174, 1
      %p178 = scmp.eq.s32.totalorder %s32, 1
      %p179 = scmp.ne.s32.totalorder %s174, %s176
      %p180 = scmp.eq.s32.totalorder %s32, 0
      %p181 = por %p179, %p180
      %p182 = scmp.ne.s32.totalorder %s174, %s176
      %p183 = scmp.eq.s32.totalorder %s37, 1
      %p184 = por %p182, %p183
      %p185 = scmp.ne.s32.totalorder %s176, %s177
      %p186 = scmp.eq.s32.totalorder %s37, 0
      %p187 = por %p185, %p186
      %p188 = scmp.ne.s32.totalorder %s176, %s177
      %p189 = scmp.eq.s32.totalorder %s38, 1
      %p190 = por %p188, %p189
      %p192 = scmp.ne.s32.totalorder %s177, %s191
      %p193 = scmp.eq.s32.totalorder %s38, 0
      %p194 = por %p192, %p193
      %s195 = ssub.s32 %s39, %s51
      %s196 = ssub.s32 %s40, %s47
      %s197 = sor.u32 %s195, %s196
      %p198 = scmp.eq.s32.totalorder %s197, 0
      %s200 = sadd.s32 %s199, 1
      %s201 = scalar_select %p198, %s199, %s200
      %p204 = pneg %p198
      %p205 = scmp.eq.s32.totalorder %s32, 1
      %p206 = por %p204, %p205
      %p207 = scmp.ne.s32.totalorder %s199, %s202
      %p208 = scmp.eq.s32.totalorder %s32, 0
      %p209 = por %p207, %p208
      %p210 = scmp.ne.s32.totalorder %s199, %s202
      %p211 = scmp.eq.s32.totalorder %s37, 1
      %p212 = por %p210, %p211
      %p213 = scmp.ne.s32.totalorder %s202, %s203
      %p214 = scmp.eq.s32.totalorder %s37, 0
      %p215 = por %p213, %p214
      %p216 = scmp.ne.s32.totalorder %s202, %s203
      %p217 = scmp.eq.s32.totalorder %s38, 1
      %p218 = por %p216, %p217
      %p220 = scmp.ne.s32.totalorder %s203, %s219
      %p221 = scmp.eq.s32.totalorder %s38, 0
      %p222 = por %p220, %p221
      %s223 = ssub.s32 %s39, %s51
      %s224 = ssub.s32 %s40, %s47
      %s225 = sor.u32 %s223, %s224
      %p226 = scmp.eq.s32.totalorder %s225, 0
      %s228 = sadd.s32 %s227, 1
      %s229 = scalar_select %p226, %s227, %s228
      %p232 = pneg %p226
      %p233 = scmp.eq.s32.totalorder %s32, 1
      %p234 = por %p232, %p233
      %p235 = scmp.ne.s32.totalorder %s227, %s230
      %p236 = scmp.eq.s32.totalorder %s32, 0
      %p237 = por %p235, %p236
      %p238 = scmp.ne.s32.totalorder %s227, %s230
      %p239 = scmp.eq.s32.totalorder %s37, 1
      %p240 = por %p238, %p239
      %p241 = scmp.ne.s32.totalorder %s230, %s231
      %p242 = scmp.eq.s32.totalorder %s37, 0
      %p243 = por %p241, %p242
      %p244 = scmp.ne.s32.totalorder %s230, %s231
      %p245 = scmp.eq.s32.totalorder %s38, 1
      %p246 = por %p244, %p245
      %p248 = scmp.ne.s32.totalorder %s231, %s247
      %p249 = scmp.eq.s32.totalorder %s38, 0
      %p250 = por %p248, %p249
      %s251 = ssub.s32 %s39, %s51
      %s252 = ssub.s32 %s40, %s47
      %s253 = sor.u32 %s251, %s252
      %p254 = scmp.eq.s32.totalorder %s253, 0
      %s256 = sadd.s32 %s255, 1
      %s257 = scalar_select %p254, %s255, %s256
      %p260 = pneg %p254
      %p261 = scmp.eq.s32.totalorder %s32, 1
      %p262 = por %p260, %p261
      %p263 = scmp.ne.s32.totalorder %s255, %s258
      %p264 = scmp.eq.s32.totalorder %s32, 0
      %p265 = por %p263, %p264
      %p266 = scmp.ne.s32.totalorder %s255, %s258
      %p267 = scmp.eq.s32.totalorder %s37, 1
      %p268 = por %p266, %p267
      %p269 = scmp.ne.s32.totalorder %s258, %s259
      %p270 = scmp.eq.s32.totalorder %s37, 0
      %p271 = por %p269, %p270
      %p272 = scmp.ne.s32.totalorder %s258, %s259
      %p273 = scmp.eq.s32.totalorder %s38, 1
      %p274 = por %p272, %p273
      %p276 = scmp.ne.s32.totalorder %s259, %s275
      %p277 = scmp.eq.s32.totalorder %s38, 0
      %p278 = por %p276, %p277
      %s279 = ssub.s32 %s39, %s51
      %s280 = ssub.s32 %s40, %s47
      %s281 = sor.u32 %s279, %s280
      %p282 = scmp.eq.s32.totalorder %s281, 0
      %s284 = sadd.s32 %s283, 1
      %s285 = scalar_select %p282, %s283, %s284
      %p288 = pneg %p282
      %p289 = scmp.eq.s32.totalorder %s32, 1
      %p290 = por %p288, %p289
      %p291 = scmp.ne.s32.totalorder %s283, %s286
      %p292 = scmp.eq.s32.totalorder %s32, 0
      %p293 = por %p291, %p292
      %p294 = scmp.ne.s32.totalorder %s283, %s286
      %p295 = scmp.eq.s32.totalorder %s37, 1
      %p296 = por %p294, %p295
      %p297 = scmp.ne.s32.totalorder %s286, %s287
      %p298 = scmp.eq.s32.totalorder %s37, 0
      %p299 = por %p297, %p298
      %p300 = scmp.ne.s32.totalorder %s286, %s287
      %p301 = scmp.eq.s32.totalorder %s38, 1
      %p302 = por %p300, %p301
      %p304 = scmp.ne.s32.totalorder %s287, %s303
      %p305 = scmp.eq.s32.totalorder %s38, 0
      %p306 = por %p304, %p305
      %p307 = scmp.le.s32.totalorder 1, %s32
      %p308 = scmp.lt.s32.totalorder %s32, 3
      %p309 = pnand %p307, %p308
      %p310 = pneg %p309
      // Predicated region
      $region9: #{tpu_custom_call.1} parent=5 // pred_check
        _
      $region10: #{tpu_custom_call.1} parent=5 // pred_check_branch
        %312 = sbr.rel (%p309) target = $region12
      $region11: #{tpu_custom_call.1} parent=5 // pred_region
        %s313 = ssub.s32 %s32, 1
        // Predicated region
        $region13: #{tpu_custom_call.1} parent=11 // pred_check
          %p314 = pneg %p65
        $region14: #{tpu_custom_call.1} parent=11 // pred_check_branch
          %316 = sbr.rel (%p314) target = $region16
        $region15: #{tpu_custom_call.1} parent=11 // pred_region
          %318 = vsyncadd [#allocation5], 0
          %s320 = sshll.u32 %s0, 4
          %s321 = int_to_ptr.hbm [resolvable:$true] %s320
          %323 = dma.hbm_to_smem %s321, 16, [#allocation2], [#allocation5]
        $region16: #{tpu_custom_call.1} parent=11 // pred_fallthru
          _
        // Predicated region
        $region17: #{tpu_custom_call.1} parent=11 // pred_check
          %p324 = pneg %p166
        $region18: #{tpu_custom_call.1} parent=11 // pred_check_branch
          %326 = sbr.rel (%p324) target = $region20
        $region19: #{tpu_custom_call.1} parent=11 // pred_region
          %328 = vsyncadd [#allocation8], 0
          %s329 = sshll.u32 %s4, 4
          %s330 = int_to_ptr.hbm [resolvable:$true] %s329
          %s331 = sshll.u32 [#allocation9], 4
          %s332 = int_to_ptr.vmem [resolvable:$true] %s331
          %337 = dma.hbm_to_vmem [thread:$0]  %s330, 4096, %s332, [#allocation8], 256, 256, 16
        $region20: #{tpu_custom_call.1} parent=11 // pred_fallthru
          _
        // Predicated region
        $region21: #{tpu_custom_call.1} parent=11 // pred_check
          %p338 = pneg %p187
        $region22: #{tpu_custom_call.1} parent=11 // pred_check_branch
          %340 = sbr.rel (%p338) target = $region24
        $region23: #{tpu_custom_call.1} parent=11 // pred_region
          _
        $region24: #{tpu_custom_call.1} parent=11 // pred_fallthru
          _
      $region12: #{tpu_custom_call.1} parent=5 // pred_fallthru
        _
      %p341 = scmp.lt.s32.totalorder %s32, 2
      // Predicated region
      $region25: #{tpu_custom_call.1} parent=5 // pred_check
        %p342 = pneg %p341
      $region26: #{tpu_custom_call.1} parent=5 // pred_check_branch
        %344 = sbr.rel (%p342) target = $region28
      $region27: #{tpu_custom_call.1} parent=5 // pred_region
        // Predicated region
        $region29: #{tpu_custom_call.1} parent=27 // pred_check
          %p345 = pneg %p87
        $region30: #{tpu_custom_call.1} parent=27 // pred_check_branch
          %347 = sbr.rel (%p345) target = $region32
        $region31: #{tpu_custom_call.1} parent=27 // pred_region
          %s348 = sand.u32 %s77, 1
          %s349 = scalar_lea.sflag [#allocation3], %s348
          %s350 = sand.u32 %s77, 1
          %s351 = smul.addr %s350, 16
          %s352 = scalar_lea.vmem [#allocation6], %s351
          %s353 = smul.u32 2, %s40
          %355 = vsyncadd %s349, 0
          %s356 = smul.addr %s39, 2
          %s357 = sadd.s32 %s353, %s356
          %s358 = smul.addr %s357, 8
          %s359 = scalar_lea.hbm %s1, %s358
          %s360 = sshll.u32 %s359, 4
          %s361 = int_to_ptr.hbm [resolvable:$true] %s360
          %s362 = sshll.u32 %s352, 4
          %s363 = int_to_ptr.vmem [resolvable:$true] %s362
          %368 = dma.hbm_to_vmem [thread:$0]  %s361, 256, %s363, %s349, 128, 128, 8
        $region32: #{tpu_custom_call.1} parent=27 // pred_fallthru
          _
        // Predicated region
        $region33: #{tpu_custom_call.1} parent=27 // pred_check
          %p369 = pneg %p113
        $region34: #{tpu_custom_call.1} parent=27 // pred_check_branch
          %371 = sbr.rel (%p369) target = $region36
        $region35: #{tpu_custom_call.1} parent=27 // pred_region
          %s372 = sand.u32 %s32, 1
          %s373 = scalar_lea.sflag [#allocation8], %s372
          %s374 = sand.u32 %s103, 1
          %s375 = smul.addr %s374, 32
          %s376 = scalar_lea.vmem [#allocation7], %s375
          %378 = vsyncadd %s373, 0
          %s379 = smul.addr %s39, 4
          %s380 = smul.addr %s379, 8
          %s381 = scalar_lea.hbm %s2, %s380
          %s382 = sshll.u32 %s381, 4
          %s383 = int_to_ptr.hbm [resolvable:$true] %s382
          %s384 = sshll.u32 %s376, 4
          %s385 = int_to_ptr.vmem [resolvable:$true] %s384
          %390 = dma.hbm_to_vmem [thread:$0]  %s383, 512, %s385, %s373, 256, 256, 16
        $region36: #{tpu_custom_call.1} parent=27 // pred_fallthru
          _
        // Predicated region
        $region37: #{tpu_custom_call.1} parent=27 // pred_check
          %p391 = pneg %p139
        $region38: #{tpu_custom_call.1} parent=27 // pred_check_branch
          %393 = sbr.rel (%p391) target = $region40
        $region39: #{tpu_custom_call.1} parent=27 // pred_region
          %p394 = scmp.lt.s32.totalorder %s39, 1
          %s395 = scalar_select %p394, %s39, 1
          %s396 = scalar_lea.vmem %s3, %s395
        $region40: #{tpu_custom_call.1} parent=27 // pred_fallthru
          _
      $region28: #{tpu_custom_call.1} parent=5 // pred_fallthru
        _
      %p397 = scmp.le.s32.totalorder 1, %s32
      %p398 = scmp.lt.s32.totalorder %s32, 3
      %p399 = pnand %p397, %p398
      %p400 = pneg %p399
      // Predicated region
      $region41: #{tpu_custom_call.1} parent=5 // pred_check
        _
      $region42: #{tpu_custom_call.1} parent=5 // pred_check_branch
        %402 = sbr.rel (%p399) target = $region44
      $region43: #{tpu_custom_call.1} parent=5 // pred_region
        %s403 = ssub.s32 %s32, 1
        // Predicated region
        $region45: #{tpu_custom_call.1} parent=43 // pred_check
          %p404 = pneg %p65
        $region46: #{tpu_custom_call.1} parent=43 // pred_check_branch
          %406 = sbr.rel (%p404) target = $region48
        $region47: #{tpu_custom_call.1} parent=43 // pred_region
          %408 = dma.done [#allocation5], 16
        $region48: #{tpu_custom_call.1} parent=43 // pred_fallthru
          _
        %s409 = sand.u32 %s80, 1
        %s410 = scalar_lea.sflag [#allocation3], %s409
        %s411 = sand.u32 %s80, 1
        %s412 = smul.addr %s411, 16
        %s413 = scalar_lea.vmem [#allocation6], %s412
        // Predicated region
        $region49: #{tpu_custom_call.1} parent=43 // pred_check
          %p414 = pneg %p93
        $region50: #{tpu_custom_call.1} parent=43 // pred_check_branch
          %416 = sbr.rel (%p414) target = $region52
        $region51: #{tpu_custom_call.1} parent=43 // pred_region
          %418 = dma.done %s410, 256
        $region52: #{tpu_custom_call.1} parent=43 // pred_fallthru
          _
        %s419 = sand.u32 %s37, 1
        %s420 = scalar_lea.sflag [#allocation8], %s419
        %s421 = sand.u32 %s106, 1
        %s422 = smul.addr %s421, 32
        %s423 = scalar_lea.vmem [#allocation7], %s422
        // Predicated region
        $region53: #{tpu_custom_call.1} parent=43 // pred_check
          %p424 = pneg %p119
        $region54: #{tpu_custom_call.1} parent=43 // pred_check_branch
          %426 = sbr.rel (%p424) target = $region56
        $region55: #{tpu_custom_call.1} parent=43 // pred_region
          %428 = dma.done %s420, 512
        $region56: #{tpu_custom_call.1} parent=43 // pred_fallthru
          _
        // Predicated region
        $region57: #{tpu_custom_call.1} parent=43 // pred_check
          %p429 = pneg %p166
        $region58: #{tpu_custom_call.1} parent=43 // pred_check_branch
          %431 = sbr.rel (%p429) target = $region60
        $region59: #{tpu_custom_call.1} parent=43 // pred_region
          %433 = dma.done [#allocation8], 4096
        $region60: #{tpu_custom_call.1} parent=43 // pred_fallthru
          _
        %434 = sfence
        %p435 = pneg %p65
        %p436 = pneg %p62
        %s437 = sand.u32 %s80, 1
        %s438 = scalar_lea.sflag [#allocation3], %s437
        %s439 = sand.u32 %s80, 1
        %s440 = smul.addr %s439, 16
        %s441 = scalar_lea.vmem [#allocation6], %s440
        %p442 = pneg %p93
        %p443 = pneg %p90
        %s444 = sand.u32 %s37, 1
        %s445 = scalar_lea.sflag [#allocation8], %s444
        %s446 = sand.u32 %s106, 1
        %s447 = smul.addr %s446, 32
        %s448 = scalar_lea.vmem [#allocation7], %s447
        %p449 = pneg %p119
        %p450 = pneg %p116
        %p451 = scmp.lt.s32.totalorder %s41, 1
        %s452 = scalar_select %p451, %s41, 1
        %s453 = scalar_lea.vmem %s3, %s452
        %p454 = pneg %p145
        %p455 = pneg %p142
        %p456 = pneg %p166
        %p457 = pneg %p163
        %p458 = pneg %p187
        %p459 = pneg %p184
        %p460 = pneg %p215
        %p461 = pneg %p212
        %s462 = sand.u32 %s202, 1
        %s463 = scalar_lea.sflag [#allocation4], %s462
        %s464 = sand.u32 %s202, 1
        %s465 = smul.addr %s464, 16
        %s466 = scalar_lea.vmem [#allocation10], %s465
        %p467 = pneg %p243
        %p468 = pneg %p240
        %s469 = sand.u32 %s37, 1
        %s470 = scalar_lea.sflag [#allocation12], %s469
        %s471 = sand.u32 %s230, 1
        %s472 = smul.addr %s471, 16
        %s473 = scalar_lea.vmem [#allocation11], %s472
        %p474 = pneg %p271
        %p475 = pneg %p268
        %s476 = sand.u32 %s37, 1
        %s477 = scalar_lea.sflag [#allocation12], %s476
        %s478 = sand.u32 %s258, 1
        %s479 = smul.addr %s478, 16
        %s480 = scalar_lea.vmem [#allocation13], %s479
        %p481 = pneg %p299
        %p482 = pneg %p296
        %s483 = sand.u32 %s286, 1
        %s484 = scalar_lea.sflag [#allocation15], %s483
        %s485 = sand.u32 %s286, 1
        %s486 = smul.addr %s485, 16
        %s487 = scalar_lea.vmem [#allocation14], %s486
        %s488 = smul.u32 2, %s42
        %p489 = scmp.lt.s32.totalorder %s41, 1
        %s490 = scalar_select %p489, %s41, 1
        %s491 = scalar_lea.vmem %s3, %s490
        %s492 = smul.u32 2, %s42
        %s493 = smul.u32 2, %s42
        %s494 = smul.u32 2, %s42
        %s495 = smul.u32 2, %s42
        %s496 = sld [smem:[#allocation2 + %s41]]
        %v497 = vld [vmem:[%s491] sm:$0x1]
        %v498 = vld [vmem:[#allocation9] sm:$0xff]
        %v499 = vld [vmem:[#allocation9 + $0x8] sm:$0xff]
        %v500 = vld [vmem:[#allocation9 + $0x10] sm:$0xff]
        %v501 = vld [vmem:[#allocation9 + $0x18] sm:$0xff]
        %v502 = vld [vmem:[#allocation9 + $0x20] sm:$0xff]
        %v503 = vld [vmem:[#allocation9 + $0x28] sm:$0xff]
        %v504 = vld [vmem:[#allocation9 + $0x30] sm:$0xff]
        %v505 = vld [vmem:[#allocation9 + $0x38] sm:$0xff]
        %v506 = vld [vmem:[#allocation9 + $0x40] sm:$0xff]
        %v507 = vld [vmem:[#allocation9 + $0x48] sm:$0xff]
        %v508 = vld [vmem:[#allocation9 + $0x50] sm:$0xff]
        %v509 = vld [vmem:[#allocation9 + $0x58] sm:$0xff]
        %v510 = vld [vmem:[#allocation9 + $0x60] sm:$0xff]
        %v511 = vld [vmem:[#allocation9 + $0x68] sm:$0xff]
        %v512 = vld [vmem:[#allocation9 + $0x70] sm:$0xff]
        %v513 = vld [vmem:[#allocation9 + $0x78] sm:$0xff]
        %v514 = vld [vmem:[#allocation9 + $0x80] sm:$0xff]
        %v515 = vld [vmem:[#allocation9 + $0x88] sm:$0xff]
        %v516 = vld [vmem:[#allocation9 + $0x90] sm:$0xff]
        %v517 = vld [vmem:[#allocation9 + $0x98] sm:$0xff]
        %v518 = vld [vmem:[#allocation9 + $0xa0] sm:$0xff]
        %v519 = vld [vmem:[#allocation9 + $0xa8] sm:$0xff]
        %v520 = vld [vmem:[#allocation9 + $0xb0] sm:$0xff]
        %v521 = vld [vmem:[#allocation9 + $0xb8] sm:$0xff]
        %v522 = vld [vmem:[#allocation9 + $0xc0] sm:$0xff]
        %v523 = vld [vmem:[#allocation9 + $0xc8] sm:$0xff]
        %v524 = vld [vmem:[#allocation9 + $0xd0] sm:$0xff]
        %v525 = vld [vmem:[#allocation9 + $0xd8] sm:$0xff]
        %v526 = vld [vmem:[#allocation9 + $0xe0] sm:$0xff]
        %v527 = vld [vmem:[#allocation9 + $0xe8] sm:$0xff]
        %v528 = vld [vmem:[#allocation9 + $0xf0] sm:$0xff]
        %v529 = vld [vmem:[#allocation9 + $0xf8] sm:$0xff]
        %v530 = vld [vmem:[%s5] sm:$0x3]
        %v531 = vld [vmem:[%s413] sm:$0xff]
        %v532 = vld [vmem:[%s413 + $0x8] sm:$0xff]
        %v533 = vld [vmem:[%s423] sm:$0xff]
        %v534 = vld [vmem:[%s423 + $0x8] sm:$0xff]
        %v535 = vld [vmem:[%s423 + $0x10] sm:$0xff]
        %v536 = vld [vmem:[%s423 + $0x18] sm:$0xff]
        %vm537 = vcmask 130048
        %v539 = vsel %vm537, %v531, 0
        %v542 = vsel %vm537, %v532, 0
        %544 = vmatpush.msra.mxu0 0.0
        %545 = vmatpush.msra.mxu0 0.0
        %546 = vmatpush.msra.mxu0 0.0
        %547 = vmatpush.msra.mxu0 0.0
        %548 = vmatpush.msra.mxu0 0.0
        %549 = vmatpush.msra.mxu0 0.0
        %550 = vmatpush.msra.mxu0 0.0
        %551 = vmatpush.msra.mxu0 0.0
        %552 = vmatpush.msra.mxu0 0.0
        %553 = vmatpush.msra.mxu0 0.0
        %554 = vmatpush.msra.mxu0 0.0
        %555 = vmatpush.msra.mxu0 0.0
        %556 = vmatpush.msra.mxu0 0.0
        %557 = vmatpush.msra.mxu0 0.0
        %558 = vmatpush.msra.mxu0 %v535
        %559 = vmatpush.msra.mxu0 %v533
        %560 = vmatmul.f32.gmra.mxu0 %v539
        %v561 = vpop.f32.mrf.mxu0
        %v562 = vadd.f32 0.0, %v561
        %563 = vmatmul.f32.gmra.mxu0 %v542
        %v564 = vpop.f32.mrf.mxu0
        %v565 = vadd.f32 0.0, %v564
        %566 = vdwg.mxu0
        %567 = vmatpush.msra.mxu0 0.0
        %568 = vmatpush.msra.mxu0 0.0
        %569 = vmatpush.msra.mxu0 0.0
        %570 = vmatpush.msra.mxu0 0.0
        %571 = vmatpush.msra.mxu0 0.0
        %572 = vmatpush.msra.mxu0 0.0
        %573 = vmatpush.msra.mxu0 0.0
        %574 = vmatpush.msra.mxu0 0.0
        %575 = vmatpush.msra.mxu0 0.0
        %576 = vmatpush.msra.mxu0 0.0
        %577 = vmatpush.msra.mxu0 0.0
        %578 = vmatpush.msra.mxu0 0.0
        %579 = vmatpush.msra.mxu0 0.0
        %580 = vmatpush.msra.mxu0 0.0
        %581 = vmatpush.msra.mxu0 %v536
        %582 = vmatpush.msra.mxu0 %v534
        %583 = vmatmul.f32.gmra.mxu0 %v539
        %v584 = vpop.f32.mrf.mxu0
        %v585 = vadd.f32 0.0, %v584
        %586 = vmatmul.f32.gmra.mxu0 %v542
        %v587 = vpop.f32.mrf.mxu0
        %v588 = vadd.f32 0.0, %v587
        %589 = vdwg.mxu0
        %v591 = vperm.slane %v497, 0
        %v593 = vadd.f32 %v562, %v591
        %v594 = vadd.f32 %v565, %v591
        %vm595 = vcmp.gt.f32.partialorder %v593, 0.0
        %vm596 = vcmp.gt.f32.partialorder %v594, 0.0
        %v597 = vstv %s496
        %v598 = vmul.f32 %v597, %v593
        %v599 = vmul.f32 %v597, %v594
        %v600 = vsel %vm595, %v593, %v598
        %v601 = vsel %vm596, %v594, %v599
        %v603 = vperm.slane %v530, 0
        %v604 = vperm.slane %v530, 1
        %607 = vmatpush.msra.mxu0 %v528
        %608 = vmatpush.msra.mxu0 %v526
        %609 = vmatpush.msra.mxu0 %v524
        %610 = vmatpush.msra.mxu0 %v522
        %611 = vmatpush.msra.mxu0 %v520
        %612 = vmatpush.msra.mxu0 %v518
        %613 = vmatpush.msra.mxu0 %v516
        %614 = vmatpush.msra.mxu0 %v514
        %615 = vmatpush.msra.mxu0 %v512
        %616 = vmatpush.msra.mxu0 %v510
        %617 = vmatpush.msra.mxu0 %v508
        %618 = vmatpush.msra.mxu0 %v506
        %619 = vmatpush.msra.mxu0 %v504
        %620 = vmatpush.msra.mxu0 %v502
        %621 = vmatpush.msra.mxu0 %v500
        %622 = vmatpush.msra.mxu0 %v498
        %623 = vmatmul.f32.gmra.mxu0 %v600
        %v624 = vpop.f32.mrf.mxu0
        %v625 = vadd.f32 %v603, %v624
        %626 = vmatmul.f32.gmra.mxu0 %v601
        %v627 = vpop.f32.mrf.mxu0
        %v628 = vadd.f32 %v603, %v627
        %629 = vdwg.mxu0
        %630 = vmatpush.msra.mxu0 %v529
        %631 = vmatpush.msra.mxu0 %v527
        %632 = vmatpush.msra.mxu0 %v525
        %633 = vmatpush.msra.mxu0 %v523
        %634 = vmatpush.msra.mxu0 %v521
        %635 = vmatpush.msra.mxu0 %v519
        %636 = vmatpush.msra.mxu0 %v517
        %637 = vmatpush.msra.mxu0 %v515
        %638 = vmatpush.msra.mxu0 %v513
        %639 = vmatpush.msra.mxu0 %v511
        %640 = vmatpush.msra.mxu0 %v509
        %641 = vmatpush.msra.mxu0 %v507
        %642 = vmatpush.msra.mxu0 %v505
        %643 = vmatpush.msra.mxu0 %v503
        %644 = vmatpush.msra.mxu0 %v501
        %645 = vmatpush.msra.mxu0 %v499
        %646 = vmatmul.f32.gmra.mxu0 %v600
        %v647 = vpop.f32.mrf.mxu0
        %v648 = vadd.f32 %v604, %v647
        %649 = vmatmul.f32.gmra.mxu0 %v601
        %v650 = vpop.f32.mrf.mxu0
        %v651 = vadd.f32 %v604, %v650
        %652 = vdwg.mxu0
        %vm653 = vcmp.gt.f32.partialorder %v625, 0.0
        %vm654 = vcmp.gt.f32.partialorder %v628, 0.0
        %v655 = vmin.f32 %v625, 0.0
        %v656 = vmin.f32 %v628, 0.0
        %v657 = vmul.f32 %v655, 1.442695
        %v658 = vpow.pop %v657
        %v659 = vmul.f32 %v656, 1.442695
        %v660 = vpow.pop %v659
        %v661 = vsub.f32 %v658, 1.0
        %v662 = vsub.f32 %v660, 1.0
        %v663 = vsel %vm653, %v625, %v661
        %v664 = vsel %vm654, %v628, %v662
        %665 = vst [vmem:[%s466] sm:$0xff] %v663
        %666 = vst [vmem:[%s466 + $0x8] sm:$0xff] %v664
        %667 = vmax.xlane.f32.xlu0 %v648
        %v668 = vpop.xlane.xlu0 %667
        %669 = vmax.xlane.f32.xlu0 %v651
        %v670 = vpop.xlane.xlu0 %669
        %v671 = vsub.f32 %v648, %v668
        %v672 = vsub.f32 %v651, %v670
        %v673 = vmul.f32 %v671, 1.442695
        %v674 = vpow.pop %v673
        %v675 = vmul.f32 %v672, 1.442695
        %v676 = vpow.pop %v675
        %677 = vadd.xlane.f32.xlu0 %v674
        %v678 = vpop.xlane.xlu0 %677
        %679 = vadd.xlane.f32.xlu0 %v676
        %v680 = vpop.xlane.xlu0 %679
        %v681 = vrcp.pop %v678
        %v682 = vrcp.pop %v680
        %v683 = vmul.f32 %v674, %v681
        %v684 = vmul.f32 %v676, %v682
        %685 = vst [vmem:[%s473] sm:$0xff] %v683
        %686 = vst [vmem:[%s473 + $0x8] sm:$0xff] %v684
        %v687 = vadd.f32 %v585, %v591
        %v688 = vadd.f32 %v588, %v591
        %vm689 = vcmp.gt.f32.partialorder %v687, 0.0
        %vm690 = vcmp.gt.f32.partialorder %v688, 0.0
        %v691 = vmul.f32 %v597, %v687
        %v692 = vmul.f32 %v597, %v688
        %v693 = vsel %vm689, %v687, %v691
        %v694 = vsel %vm690, %v688, %v692
        %695 = vmatpush.msra.mxu0 %v528
        %696 = vmatpush.msra.mxu0 %v526
        %697 = vmatpush.msra.mxu0 %v524
        %698 = vmatpush.msra.mxu0 %v522
        %699 = vmatpush.msra.mxu0 %v520
        %700 = vmatpush.msra.mxu0 %v518
        %701 = vmatpush.msra.mxu0 %v516
        %702 = vmatpush.msra.mxu0 %v514
        %703 = vmatpush.msra.mxu0 %v512
        %704 = vmatpush.msra.mxu0 %v510
        %705 = vmatpush.msra.mxu0 %v508
        %706 = vmatpush.msra.mxu0 %v506
        %707 = vmatpush.msra.mxu0 %v504
        %708 = vmatpush.msra.mxu0 %v502
        %709 = vmatpush.msra.mxu0 %v500
        %710 = vmatpush.msra.mxu0 %v498
        %711 = vmatmul.f32.gmra.mxu0 %v693
        %v712 = vpop.f32.mrf.mxu0
        %v713 = vadd.f32 %v603, %v712
        %714 = vmatmul.f32.gmra.mxu0 %v694
        %v715 = vpop.f32.mrf.mxu0
        %v716 = vadd.f32 %v603, %v715
        %717 = vdwg.mxu0
        %718 = vmatpush.msra.mxu0 %v529
        %719 = vmatpush.msra.mxu0 %v527
        %720 = vmatpush.msra.mxu0 %v525
        %721 = vmatpush.msra.mxu0 %v523
        %722 = vmatpush.msra.mxu0 %v521
        %723 = vmatpush.msra.mxu0 %v519
        %724 = vmatpush.msra.mxu0 %v517
        %725 = vmatpush.msra.mxu0 %v515
        %726 = vmatpush.msra.mxu0 %v513
        %727 = vmatpush.msra.mxu0 %v511
        %728 = vmatpush.msra.mxu0 %v509
        %729 = vmatpush.msra.mxu0 %v507
        %730 = vmatpush.msra.mxu0 %v505
        %731 = vmatpush.msra.mxu0 %v503
        %732 = vmatpush.msra.mxu0 %v501
        %733 = vmatpush.msra.mxu0 %v499
        %734 = vmatmul.f32.gmra.mxu0 %v693
        %v735 = vpop.f32.mrf.mxu0
        %v736 = vadd.f32 %v604, %v735
        %737 = vmatmul.f32.gmra.mxu0 %v694
        %v738 = vpop.f32.mrf.mxu0
        %v739 = vadd.f32 %v604, %v738
        %740 = vdwg.mxu0
        %vm741 = vcmp.gt.f32.partialorder %v713, 0.0
        %vm742 = vcmp.gt.f32.partialorder %v716, 0.0
        %v743 = vmin.f32 %v713, 0.0
        %v744 = vmin.f32 %v716, 0.0
        %v745 = vmul.f32 %v743, 1.442695
        %v746 = vpow.pop %v745
        %v747 = vmul.f32 %v744, 1.442695
        %v748 = vpow.pop %v747
        %v749 = vsub.f32 %v746, 1.0
        %v750 = vsub.f32 %v748, 1.0
        %v751 = vsel %vm741, %v713, %v749
        %v752 = vsel %vm742, %v716, %v750
        %753 = vst [vmem:[%s480] sm:$0xff] %v751
        %754 = vst [vmem:[%s480 + $0x8] sm:$0xff] %v752
        %755 = vmax.xlane.f32.xlu0 %v736
        %v756 = vpop.xlane.xlu0 %755
        %757 = vmax.xlane.f32.xlu0 %v739
        %v758 = vpop.xlane.xlu0 %757
        %v759 = vsub.f32 %v736, %v756
        %v760 = vsub.f32 %v739, %v758
        %v761 = vmul.f32 %v759, 1.442695
        %v762 = vpow.pop %v761
        %v763 = vmul.f32 %v760, 1.442695
        %v764 = vpow.pop %v763
        %765 = vadd.xlane.f32.xlu0 %v762
        %v766 = vpop.xlane.xlu0 %765
        %767 = vadd.xlane.f32.xlu0 %v764
        %v768 = vpop.xlane.xlu0 %767
        %v769 = vrcp.pop %v766
        %v770 = vrcp.pop %v768
        %v771 = vmul.f32 %v762, %v769
        %v772 = vmul.f32 %v764, %v770
        %773 = vst [vmem:[%s487] sm:$0xff] %v771
        %774 = vst [vmem:[%s487 + $0x8] sm:$0xff] %v772
        %s775 = sand.u32 %s202, 1
        %s776 = scalar_lea.sflag [#allocation4], %s775
        %s777 = sand.u32 %s202, 1
        %s778 = smul.addr %s777, 16
        %s779 = scalar_lea.vmem [#allocation10], %s778
        %s780 = sand.u32 %s37, 1
        %s781 = scalar_lea.sflag [#allocation12], %s780
        %s782 = sand.u32 %s230, 1
        %s783 = smul.addr %s782, 16
        %s784 = scalar_lea.vmem [#allocation11], %s783
        %s785 = sand.u32 %s37, 1
        %s786 = scalar_lea.sflag [#allocation12], %s785
        %s787 = sand.u32 %s258, 1
        %s788 = smul.addr %s787, 16
        %s789 = scalar_lea.vmem [#allocation13], %s788
        %s790 = sand.u32 %s286, 1
        %s791 = scalar_lea.sflag [#allocation15], %s790
        %s792 = sand.u32 %s286, 1
        %s793 = smul.addr %s792, 16
        %s794 = scalar_lea.vmem [#allocation14], %s793
        // Predicated region
        $region61: #{tpu_custom_call.1} parent=43 // pred_check
          %p795 = pneg %p212
        $region62: #{tpu_custom_call.1} parent=43 // pred_check_branch
          %797 = sbr.rel (%p795) target = $region64
        $region63: #{tpu_custom_call.1} parent=43 // pred_region
          %s798 = smul.u32 2, %s42
          %800 = vsyncadd %s776, 0
          %s801 = smul.addr %s41, 2
          %s802 = sadd.s32 %s798, %s801
          %s803 = smul.addr %s802, 8
          %s804 = scalar_lea.hbm %s6, %s803
          %s805 = sshll.u32 %s779, 4
          %s806 = int_to_ptr.vmem [resolvable:$true] %s805
          %s807 = sshll.u32 %s804, 4
          %s808 = int_to_ptr.hbm [resolvable:$true] %s807
          %813 = dma.vmem_to_hbm [thread:$0]  %s806, 256, %s808, %s776, 128, 128, 8
        $region64: #{tpu_custom_call.1} parent=43 // pred_fallthru
          _
        // Predicated region
        $region65: #{tpu_custom_call.1} parent=43 // pred_check
          %p814 = pneg %p240
        $region66: #{tpu_custom_call.1} parent=43 // pred_check_branch
          %816 = sbr.rel (%p814) target = $region68
        $region67: #{tpu_custom_call.1} parent=43 // pred_region
          %s817 = smul.u32 2, %s42
          %819 = vsyncadd %s781, 0
          %s820 = smul.addr %s41, 2
          %s821 = sadd.s32 %s817, %s820
          %s822 = smul.addr %s821, 8
          %s823 = scalar_lea.hbm %s7, %s822
          %s824 = sshll.u32 %s784, 4
          %s825 = int_to_ptr.vmem [resolvable:$true] %s824
          %s826 = sshll.u32 %s823, 4
          %s827 = int_to_ptr.hbm [resolvable:$true] %s826
          %832 = dma.vmem_to_hbm [thread:$0]  %s825, 256, %s827, %s781, 128, 128, 8
        $region68: #{tpu_custom_call.1} parent=43 // pred_fallthru
          _
        // Predicated region
        $region69: #{tpu_custom_call.1} parent=43 // pred_check
          %p833 = pneg %p268
        $region70: #{tpu_custom_call.1} parent=43 // pred_check_branch
          %835 = sbr.rel (%p833) target = $region72
        $region71: #{tpu_custom_call.1} parent=43 // pred_region
          %s836 = smul.u32 2, %s42
          %838 = vsyncadd %s786, 0
          %s839 = smul.addr %s41, 2
          %s840 = sadd.s32 %s836, %s839
          %s841 = smul.addr %s840, 8
          %s842 = scalar_lea.hbm %s8, %s841
          %s843 = sshll.u32 %s789, 4
          %s844 = int_to_ptr.vmem [resolvable:$true] %s843
          %s845 = sshll.u32 %s842, 4
          %s846 = int_to_ptr.hbm [resolvable:$true] %s845
          %851 = dma.vmem_to_hbm [thread:$0]  %s844, 256, %s846, %s786, 128, 128, 8
        $region72: #{tpu_custom_call.1} parent=43 // pred_fallthru
          _
        // Predicated region
        $region73: #{tpu_custom_call.1} parent=43 // pred_check
          %p852 = pneg %p296
        $region74: #{tpu_custom_call.1} parent=43 // pred_check_branch
          %854 = sbr.rel (%p852) target = $region76
        $region75: #{tpu_custom_call.1} parent=43 // pred_region
          %s855 = smul.u32 2, %s42
          %857 = vsyncadd %s791, 0
          %s858 = smul.addr %s41, 2
          %s859 = sadd.s32 %s855, %s858
          %s860 = smul.addr %s859, 8
          %s861 = scalar_lea.hbm %s9, %s860
          %s862 = sshll.u32 %s794, 4
          %s863 = int_to_ptr.vmem [resolvable:$true] %s862
          %s864 = sshll.u32 %s861, 4
          %s865 = int_to_ptr.hbm [resolvable:$true] %s864
          %870 = dma.vmem_to_hbm [thread:$0]  %s863, 256, %s865, %s791, 128, 128, 8
        $region76: #{tpu_custom_call.1} parent=43 // pred_fallthru
          _
      $region44: #{tpu_custom_call.1} parent=5 // pred_fallthru
        _
      %p871 = scmp.le.s32.totalorder 2, %s32
      // Predicated region
      $region77: #{tpu_custom_call.1} parent=5 // pred_check
        %p872 = pneg %p871
      $region78: #{tpu_custom_call.1} parent=5 // pred_check_branch
        %874 = sbr.rel (%p872) target = $region80
      $region79: #{tpu_custom_call.1} parent=5 // pred_region
        %s875 = ssub.s32 %s32, 2
        // Predicated region
        $region81: #{tpu_custom_call.1} parent=79 // pred_check
          %p876 = pneg %p218
        $region82: #{tpu_custom_call.1} parent=79 // pred_check_branch
          %878 = sbr.rel (%p876) target = $region84
        $region83: #{tpu_custom_call.1} parent=79 // pred_region
          %s879 = sand.u32 %s203, 1
          %s880 = scalar_lea.sflag [#allocation4], %s879
          %s881 = sand.u32 %s203, 1
          %s882 = smul.addr %s881, 16
          %s883 = scalar_lea.vmem [#allocation10], %s882
          %885 = dma.done %s880, 256
        $region84: #{tpu_custom_call.1} parent=79 // pred_fallthru
          _
        // Predicated region
        $region85: #{tpu_custom_call.1} parent=79 // pred_check
          %p886 = pneg %p246
        $region86: #{tpu_custom_call.1} parent=79 // pred_check_branch
          %888 = sbr.rel (%p886) target = $region88
        $region87: #{tpu_custom_call.1} parent=79 // pred_region
          %s889 = sand.u32 %s38, 1
          %s890 = scalar_lea.sflag [#allocation12], %s889
          %s891 = sand.u32 %s231, 1
          %s892 = smul.addr %s891, 16
          %s893 = scalar_lea.vmem [#allocation11], %s892
          %895 = dma.done %s890, 256
        $region88: #{tpu_custom_call.1} parent=79 // pred_fallthru
          _
        // Predicated region
        $region89: #{tpu_custom_call.1} parent=79 // pred_check
          %p896 = pneg %p274
        $region90: #{tpu_custom_call.1} parent=79 // pred_check_branch
          %898 = sbr.rel (%p896) target = $region92
        $region91: #{tpu_custom_call.1} parent=79 // pred_region
          %s899 = sand.u32 %s38, 1
          %s900 = scalar_lea.sflag [#allocation12], %s899
          %s901 = sand.u32 %s259, 1
          %s902 = smul.addr %s901, 16
          %s903 = scalar_lea.vmem [#allocation13], %s902
          %905 = dma.done %s900, 256
        $region92: #{tpu_custom_call.1} parent=79 // pred_fallthru
          _
        // Predicated region
        $region93: #{tpu_custom_call.1} parent=79 // pred_check
          %p906 = pneg %p302
        $region94: #{tpu_custom_call.1} parent=79 // pred_check_branch
          %908 = sbr.rel (%p906) target = $region96
        $region95: #{tpu_custom_call.1} parent=79 // pred_region
          %s909 = sand.u32 %s287, 1
          %s910 = scalar_lea.sflag [#allocation15], %s909
          %s911 = sand.u32 %s287, 1
          %s912 = smul.addr %s911, 16
          %s913 = scalar_lea.vmem [#allocation14], %s912
          %915 = dma.done %s910, 256
        $region96: #{tpu_custom_call.1} parent=79 // pred_fallthru
          _
      $region80: #{tpu_custom_call.1} parent=5 // pred_fallthru
        _
    $region6: #{tpu_custom_call.1} parent=1 // loop_footer
      %s36 = sadd.s32 1, %s32
    $region7: #{tpu_custom_call.1} parent=1 // loop_footer_branch
      %31 = sbr.rel target = $region3
    $region8: #{tpu_custom_call.1} parent=1 // loop_exit
      _
    %916 = vsyncpa [#allocation3], 1
    %s917 = scalar_lea.sflag [#allocation3], 1
    %918 = vsyncpa %s917, 1
    %919 = vsyncpa [#allocation8], 1
    %s920 = scalar_lea.sflag [#allocation8], 1
    %921 = vsyncpa %s920, 1
    %922 = vsyncpa [#allocation4], 1
    %s923 = scalar_lea.sflag [#allocation4], 1
    %924 = vsyncpa %s923, 1
    %925 = vsyncpa [#allocation12], 1
    %s926 = scalar_lea.sflag [#allocation12], 1
    %927 = vsyncpa %s926, 1
    %928 = vsyncpa [#allocation15], 1
    %s929 = scalar_lea.sflag [#allocation15], 1
    %930 = vsyncpa %s929, 1
    %931 = vsyncpa [#allocation5], 1
    %s932 = scalar_lea.sflag [#allocation5], 1
    %933 = vsyncpa %s932, 1

</llo_original>
